<compile_context>
chip_gen: v5e
topology: v5e:2x2
jax: 0.10.0
libtpu: 0.0.40
codegen_flags: <defaults>
</compile_context>

<pallas_src>
import functools

import numpy as np
import jax
import jax.numpy as jnp
from jax.experimental import pallas as pl
from jax.experimental.pallas import tpu as pltpu

SIZES = (1, 2, 3, 6)
_LANE = 128
_SUBLANE = 8


def _ceil_div(a, b):
    return -((-a) // b)


def _round_up(a, b):
    return _ceil_div(a, b) * b


@functools.lru_cache(maxsize=None)
def _build_pool_matrix(H, W, sizes, k_pad):
    """M[h*W+w, k] = 1/window_size if (h,w) lies inside the adaptive-avg-pool
    window of output cell k (k concatenated over pyramid sizes, matching
    PyTorch's AdaptiveAvgPool2d window boundaries). Columns >= sum(s*s) are
    zero padding so the kernel output is lane-dense (width multiple of 128)."""
    K = sum(s * s for s in sizes)
    assert k_pad >= K
    M = np.zeros((H * W, k_pad), dtype=np.float32)
    off = 0
    for s in sizes:
        for oh in range(s):
            h0 = (oh * H) // s
            h1 = _ceil_div((oh + 1) * H, s)
            for ow in range(s):
                w0 = (ow * W) // s
                w1 = _ceil_div((ow + 1) * W, s)
                k = off + oh * s + ow
                wgt = 1.0 / ((h1 - h0) * (w1 - w0))
                for h in range(h0, h1):
                    M[h * W + w0:h * W + w1, k] = wgt
        off += s * s
    return M


def _spp_kernel(x_ref, m_ref, o_ref):
    # Hot path: (TILE_R, H*W) @ (H*W, K_pad) adaptive-pool reduction on the MXU.
    o_ref[...] = jnp.dot(
        x_ref[...], m_ref[...], preferred_element_type=jnp.float32
    ).astype(o_ref.dtype)


def spp_module(x, sizes=SIZES, use_bf16=False):
    """Forward pass of SPPModule(pool_mode='avg', sizes) on TPU via Pallas."""
    sizes = tuple(sizes)
    N, C, H, W = x.shape
    HW = H * W
    K = sum(s * s for s in sizes)
    KP = _round_up(max(K, _LANE), _LANE)            # lane-dense output width

    # Default keeps f32 compute: window weights like 1/30, 1/36 are inexact in
    # bf16. use_bf16=True halves the dominant HBM read of x (f32 accumulation
    # is preserved via preferred_element_type).
    compute_dtype = jnp.bfloat16 if use_bf16 else x.dtype
    itemsize = jnp.dtype(compute_dtype).itemsize
    out_itemsize = jnp.dtype(x.dtype).itemsize
    row_align = 16 if itemsize == 2 else _SUBLANE   # bf16 packs 16 sublanes

    # --- row tiling: amortize per-step overhead, stay within v7x VMEM ---
    R = N * C
    R_al = _round_up(R, row_align)                  # sublane-aligned row count
    x_tile_budget = 24 << 20                        # double-buffered x tile
    max_rows_by_vmem = (x_tile_budget // (2 * HW * itemsize)) // row_align * row_align
    TILE_R = min(1024, R_al, max(max_rows_by_vmem, row_align))
    TILE_R = max(TILE_R, row_align)
    grid = (pl.cdiv(R_al, TILE_R),)                 # partial last block is masked

    # --- operands ---
    M = jnp.asarray(_build_pool_matrix(H, W, sizes, KP), dtype=compute_dtype)
    x_flat = x.reshape(R, HW)
    if x_flat.dtype != compute_dtype:
        x_flat = x_flat.astype(compute_dtype)
    if R_al != R:                                   # rare: N*C not 8/16-aligned
        x_flat = jnp.pad(x_flat, ((0, R_al - R), (0, 0)))

    # --- compiler params / cost hint ---
    vmem_bytes = (2 * TILE_R * HW * itemsize        # double-buffered x tile
                  + 2 * TILE_R * KP * out_itemsize  # double-buffered out tile
                  + 2 * HW * KP * itemsize)         # resident pooling matrix
    vmem_limit = min(64 << 20, max(vmem_bytes + (8 << 20), 32 << 20))

    cost = pl.CostEstimate(
        flops=2 * R_al * HW * KP,
        transcendentals=0,
        bytes_accessed=(R_al * HW + HW * KP) * itemsize + R_al * KP * out_itemsize,
    )

    pooled = pl.pallas_call(
        _spp_kernel,
        out_shape=jax.ShapeDtypeStruct((R_al, KP), x.dtype),
        grid=grid,
        in_specs=[
            pl.BlockSpec((TILE_R, HW), lambda i: (i, 0)),
            pl.BlockSpec((HW, KP), lambda i: (0, 0)),   # M resident across steps
        ],
        out_specs=pl.BlockSpec((TILE_R, KP), lambda i: (i, 0)),
        compiler_params=pltpu.CompilerParams(
            dimension_semantics=("parallel",),
            vmem_limit_bytes=vmem_limit,
        ),
        cost_estimate=cost,
    )(x_flat, M)

    # Glue: reproduce PyTorch's per-level Flatten (channel-major) + cat(dim=1)
    # + view(N, -1, 1, 1). Pure layout; fused by jit around the pallas_call.
    pooled = pooled[:R, :K].reshape(N, C, K)
    chunks = []
    off = 0
    for s in sizes:
        chunks.append(pooled[:, :, off:off + s * s].reshape(N, C * s * s))
        off += s * s
    out = jnp.concatenate(chunks, axis=1)
    return out.reshape(N, out.shape[1], 1, 1)


def spp_reference(x_np, sizes=SIZES):
    """Pure-numpy adaptive avg pool reference matching PyTorch semantics."""
    N, C, H, W = x_np.shape
    outs = []
    for s in sizes:
        pooled = np.zeros((N, C, s, s), dtype=np.float32)
        for oh in range(s):
            h0, h1 = (oh * H) // s, _ceil_div((oh + 1) * H, s)
            for ow in range(s):
                w0, w1 = (ow * W) // s, _ceil_div((ow + 1) * W, s)
                pooled[:, :, oh, ow] = x_np[:, :, h0:h1, w0:w1].mean(axis=(2, 3))
        outs.append(pooled.reshape(N, -1))
    out = np.concatenate(outs, axis=1)
    return out.reshape(N, -1, 1, 1)


if __name__ == "__main__":
    key = jax.random.PRNGKey(0)
    x = jax.random.normal(key, (2, 4, 16, 16), dtype=jnp.float32)

    fwd = jax.jit(spp_module)
    y = jax.block_until_ready(fwd(x))

    # correctness check against adaptive-avg-pool semantics
    y_ref = spp_reference(np.asarray(x))
    assert y.shape == (2, 4 * sum(s * s for s in SIZES), 1, 1), y.shape
    np.testing.assert_allclose(np.asarray(y), y_ref, rtol=1e-5, atol=1e-5)

    print("KERNEL_OK")
</pallas_src>

<mosaic_0001>
module attributes {stable_mosaic.version = 11 : i64} {
  func.func @_spp_kernel(%arg0: i32, %arg1: memref<8x256xf32, #tpu.memory_space<vmem>>, %arg2: memref<256x128xf32, #tpu.memory_space<vmem>>, %arg3: memref<8x128xf32, #tpu.memory_space<vmem>>) attributes {dimension_semantics = [#tpu.dimension_semantics<parallel>], iteration_bounds = array<i64: 1>, scalar_prefetch = 0 : i64, scratch_operands = 0 : i64, tpu.core_type = #tpu.core_type<tc>, window_params = [{transform_indices = @transform_0, window_bounds = array<i64: 8, 256>}, {pipeline_mode = #tpu.pipeline_mode<synchronous>, transform_indices = @transform_1, window_bounds = array<i64: 256, 128>}, {transform_indices = @transform_2, window_bounds = array<i64: 8, 128>}]} {
    %c0 = arith.constant 0 : index
    %c0_0 = arith.constant 0 : index
    %0 = vector.load %arg1[%c0, %c0_0] : memref<8x256xf32, #tpu.memory_space<vmem>>, vector<8x256xf32>
    %c0_1 = arith.constant 0 : index
    %c0_2 = arith.constant 0 : index
    %1 = vector.load %arg2[%c0_1, %c0_2] : memref<256x128xf32, #tpu.memory_space<vmem>>, vector<256x128xf32>
    %cst = arith.constant dense<0.000000e+00> : vector<8x128xf32>
    %2 = tpu.matmul %0, %1, %cst {dimension_numbers = #tpu.dot_dimension_numbers<[1], [0], [0], [1], [0, 0, 1, 1], [], []>} : vector<8x256xf32>, vector<256x128xf32>, vector<8x128xf32> -> vector<8x128xf32>
    %c0_3 = arith.constant 0 : index
    %c0_4 = arith.constant 0 : index
    %3 = vector.load %arg3[%c0_3, %c0_4] : memref<8x128xf32, #tpu.memory_space<vmem>>, vector<8x128xf32>
    tpu.vector_store %arg3[%c0_3, %c0_4], %2 {strides = array<i32>} : memref<8x128xf32, #tpu.memory_space<vmem>>, vector<8x128xf32>,
    return
  }
  func.func @transform_0(%arg0: i32) -> (i32, i32) {
    %c0_i32 = arith.constant 0 : i32
    %c0_i32_0 = arith.constant 0 : i32
    return %arg0, %c0_i32 : i32, i32
  }
  func.func @transform_1(%arg0: i32) -> (i32, i32) {
    %c0_i32 = arith.constant 0 : i32
    %c0_i32_0 = arith.constant 0 : i32
    %c0_i32_1 = arith.constant 0 : i32
    return %c0_i32, %c0_i32_0 : i32, i32
  }
  func.func @transform_2(%arg0: i32) -> (i32, i32) {
    %c0_i32 = arith.constant 0 : i32
    %c0_i32_0 = arith.constant 0 : i32
    return %arg0, %c0_i32 : i32, i32
  }
}

</mosaic_0001>

<llo_original>
// kernel: spp_module.1
$region0: #{spp_module.1}
  #allocation0 [shape = 'u32[]', space=smem, size = 0x4, offset = 0x4, fixed_abs, tag = 'smem constant byte address 0x4 - core index']
  #allocation1 [shape = 'u32[72,128]{1,0:T(1,128)}', space=vmem, size = 0x9000, scoped, tag = 'internal scratch']
  %s0 = inlined_call_operand.vmem [shape: f32[8,256], index: 0, kind: input, shape index: {}]
  %s1 = inlined_call_operand.hbm [shape: f32[256,128], index: 1, kind: input, shape index: {}]
  %s2 = inlined_call_operand.vmem [shape: f32[8,128], index: 2, kind: output, shape index: {}]
  %s3 = sld [smem:[#allocation0]]
  $region22: #{spp_module.1} parent=0
    _
  %s5 = ssub.s32 1, %s3
  %s6 = scalar_select 0, %s5, %s3
  $region1: #{spp_module.1} parent=0
    #allocation2 [shape = 'u8[131072]{0}', space=vmem, size = 0x20000, scoped, tag = 'input window, operand 1, single buffered']
    #allocation3 [shape = 's32[1]{0}', space=sflag, size = 0x4, scoped, tag = 'scoped memory for spp_module.1']
    %7 = vsyncpa [#allocation3], 0
    // Predicated region
    $region2: #{spp_module.1} parent=1 // pred_check
      _
    $region3: #{spp_module.1} parent=1 // pred_check_branch
      %9 = sbr.rel (0) target = $region5
    $region4: #{spp_module.1} parent=1 // pred_region
      _
    $region5: #{spp_module.1} parent=1 // pred_fallthru
      _
    // Predicated region
    $region6: #{spp_module.1} parent=1 // pred_check
      _
    $region7: #{spp_module.1} parent=1 // pred_check_branch
      %11 = sbr.rel (0) target = $region9
    $region8: #{spp_module.1} parent=1 // pred_region
      %13 = vsyncadd [#allocation3], 0
      %s14 = sshll.u32 %s1, 4
      %s15 = int_to_ptr.hbm [resolvable:$true] %s14
      %s16 = sshll.u32 [#allocation2], 4
      %s17 = int_to_ptr.vmem [resolvable:$true] %s16
      %22 = dma.hbm_to_vmem [thread:$0]  %s15, 4096, %s17, [#allocation3], 128, 128, 8
    $region9: #{spp_module.1} parent=1 // pred_fallthru
      _
    // Predicated region
    $region10: #{spp_module.1} parent=1 // pred_check
      _
    $region11: #{spp_module.1} parent=1 // pred_check_branch
      %24 = sbr.rel (0) target = $region13
    $region12: #{spp_module.1} parent=1 // pred_region
      %26 = dma.done [#allocation3], 4096
    $region13: #{spp_module.1} parent=1 // pred_fallthru
      _
    %v27 = vld [vmem:[%s0] sm:$0xff]
    %v28 = vld [vmem:[%s0 + $0x8] sm:$0xff]
    %v29 = vld [vmem:[#allocation2] sm:$0xff]
    %v30 = vld [vmem:[#allocation2 + $0x8] sm:$0xff]
    %v31 = vld [vmem:[#allocation2 + $0x10] sm:$0xff]
    %v32 = vld [vmem:[#allocation2 + $0x18] sm:$0xff]
    %v33 = vld [vmem:[#allocation2 + $0x20] sm:$0xff]
    %v34 = vld [vmem:[#allocation2 + $0x28] sm:$0xff]
    %v35 = vld [vmem:[#allocation2 + $0x30] sm:$0xff]
    %v36 = vld [vmem:[#allocation2 + $0x38] sm:$0xff]
    %v37 = vld [vmem:[#allocation2 + $0x40] sm:$0xff]
    %v38 = vld [vmem:[#allocation2 + $0x48] sm:$0xff]
    %v39 = vld [vmem:[#allocation2 + $0x50] sm:$0xff]
    %v40 = vld [vmem:[#allocation2 + $0x58] sm:$0xff]
    %v41 = vld [vmem:[#allocation2 + $0x60] sm:$0xff]
    %v42 = vld [vmem:[#allocation2 + $0x68] sm:$0xff]
    %v43 = vld [vmem:[#allocation2 + $0x70] sm:$0xff]
    %v44 = vld [vmem:[#allocation2 + $0x78] sm:$0xff]
    %v45 = vld [vmem:[#allocation2 + $0x80] sm:$0xff]
    %v46 = vld [vmem:[#allocation2 + $0x88] sm:$0xff]
    %v47 = vld [vmem:[#allocation2 + $0x90] sm:$0xff]
    %v48 = vld [vmem:[#allocation2 + $0x98] sm:$0xff]
    %v49 = vld [vmem:[#allocation2 + $0xa0] sm:$0xff]
    %v50 = vld [vmem:[#allocation2 + $0xa8] sm:$0xff]
    %v51 = vld [vmem:[#allocation2 + $0xb0] sm:$0xff]
    %v52 = vld [vmem:[#allocation2 + $0xb8] sm:$0xff]
    %v53 = vld [vmem:[#allocation2 + $0xc0] sm:$0xff]
    %v54 = vld [vmem:[#allocation2 + $0xc8] sm:$0xff]
    %v55 = vld [vmem:[#allocation2 + $0xd0] sm:$0xff]
    %v56 = vld [vmem:[#allocation2 + $0xd8] sm:$0xff]
    %v57 = vld [vmem:[#allocation2 + $0xe0] sm:$0xff]
    %v58 = vld [vmem:[#allocation2 + $0xe8] sm:$0xff]
    %v59 = vld [vmem:[#allocation2 + $0xf0] sm:$0xff]
    %v60 = vld [vmem:[#allocation2 + $0xf8] sm:$0xff]
    %61 = vmatpush.msra.mxu0 %v44
    %62 = vmatpush.msra.mxu0 %v43
    %63 = vmatpush.msra.mxu0 %v42
    %64 = vmatpush.msra.mxu0 %v41
    %65 = vmatpush.msra.mxu0 %v40
    %66 = vmatpush.msra.mxu0 %v39
    %67 = vmatpush.msra.mxu0 %v38
    %68 = vmatpush.msra.mxu0 %v37
    %69 = vmatpush.msra.mxu0 %v36
    %70 = vmatpush.msra.mxu0 %v35
    %71 = vmatpush.msra.mxu0 %v34
    %72 = vmatpush.msra.mxu0 %v33
    %73 = vmatpush.msra.mxu0 %v32
    %74 = vmatpush.msra.mxu0 %v31
    %75 = vmatpush.msra.mxu0 %v30
    %76 = vmatpush.msra.mxu0 %v29
    %77 = vmatmul.f32.gmra.mxu0 %v27
    %v78 = vpop.f32.mrf.mxu0
    %v79 = vadd.f32 0.0, %v78
    %80 = vdwg.mxu0
    %81 = vmatpush.msra.mxu0 %v60
    %82 = vmatpush.msra.mxu0 %v59
    %83 = vmatpush.msra.mxu0 %v58
    %84 = vmatpush.msra.mxu0 %v57
    %85 = vmatpush.msra.mxu0 %v56
    %86 = vmatpush.msra.mxu0 %v55
    %87 = vmatpush.msra.mxu0 %v54
    %88 = vmatpush.msra.mxu0 %v53
    %89 = vmatpush.msra.mxu0 %v52
    %90 = vmatpush.msra.mxu0 %v51
    %91 = vmatpush.msra.mxu0 %v50
    %92 = vmatpush.msra.mxu0 %v49
    %93 = vmatpush.msra.mxu0 %v48
    %94 = vmatpush.msra.mxu0 %v47
    %95 = vmatpush.msra.mxu0 %v46
    %96 = vmatpush.msra.mxu0 %v45
    %97 = vmatmul.f32.gmra.mxu0 %v28
    %v98 = vpop.f32.mrf.mxu0
    %v99 = vadd.f32 %v79, %v98
    %100 = vdwg.mxu0
    %101 = vst [vmem:[%s2] sm:$0xff] %v99
    // Predicated region
    $region14: #{spp_module.1} parent=1 // pred_check
      _
    $region15: #{spp_module.1} parent=1 // pred_check_branch
      %103 = sbr.rel (0) target = $region17
    $region16: #{spp_module.1} parent=1 // pred_region
      _
    $region17: #{spp_module.1} parent=1 // pred_fallthru
      _
    // Predicated region
    $region18: #{spp_module.1} parent=1 // pred_check
      _
    $region19: #{spp_module.1} parent=1 // pred_check_branch
      %105 = sbr.rel (0) target = $region21
    $region20: #{spp_module.1} parent=1 // pred_region
      _
    $region21: #{spp_module.1} parent=1 // pred_fallthru
      _
    %106 = vsyncpa [#allocation3], 1

</llo_original>
